<compile_context>
chip_gen: v6e
topology: v6e:2x2x1
jax: 0.10.0
libtpu: 0.0.40
codegen_flags: <defaults>
</compile_context>

<pallas_src>
import jax
import jax.numpy as jnp
from jax.experimental import pallas as pl
from jax.experimental.pallas import tpu as pltpu


def _round_up(x, m):
    return ((x + m - 1) // m) * m


def _fc_head_kernel(x_ref, w1_ref, b1_ref, w2_ref, bout_ref, o_ref):
    """o = relu(x @ w1 + b1) @ w2 + b_out.

      x     : (TB, Din)      bf16   (streamed batch tile)
      w1    : (Din, H)       bf16   (resident)
      b1    : (1, H)         f32    (resident)
      w2    : (H, OUT_pad)   bf16   (resident)
      b_out : (1, OUT_pad)   f32    (= b2 + init_betas, lane-padded, resident)
      o     : (TB, OUT_pad)  f32
    """
    h = jnp.dot(x_ref[...], w1_ref[...], preferred_element_type=jnp.float32)
    h = jnp.maximum(h + b1_ref[...], 0.0)  # bias once, then ReLU
    y = jnp.dot(h.astype(w2_ref.dtype), w2_ref[...],
                preferred_element_type=jnp.float32) + bout_ref[...]
    o_ref[...] = y.astype(o_ref.dtype)


def fc_head_beta_forward(feats, pred_pose, w1, b1, w2, b2, init_betas,
                         condition_on_pose=True, block_b=None):
    """feats: (B, Df), pred_pose: (B, Dp) or None.

    w1: (Din, H) with Din = Df (+ Dp if condition_on_pose), b1: (H,)
    w2: (H, 10), b2: (10,), init_betas: (1, 10)
    Returns pred_betas: (B, 10) float32.
    """
    B = feats.shape[0]
    hidden, out_dim = w2.shape

    # Fuse the concatenation once wrapper-side (single input stream, true K).
    if condition_on_pose:
        x = jnp.concatenate([feats, pred_pose], axis=-1)
    else:
        x = feats
    in_dim = x.shape[1]
    assert w1.shape[0] == in_dim and w1.shape[1] == hidden

    # bf16 operands for the MXU; accumulation stays f32 inside the kernel.
    x = x.astype(jnp.bfloat16)
    w1_b = w1.astype(jnp.bfloat16)

    # Lane-dense output: pad the 10-wide output dim of W2 / bias to 128 lanes
    # (weight-side padding is tiny and one-time); fold init_betas into b2.
    out_p = _round_up(out_dim, 128)
    w2_b = jnp.pad(w2, ((0, 0), (0, out_p - out_dim))).astype(jnp.bfloat16)
    b_out = (b2.reshape(1, -1) + init_betas.reshape(1, -1)).astype(jnp.float32)
    b_out_p = jnp.pad(b_out, ((0, 0), (0, out_p - out_dim)))
    b1_2d = b1.reshape(1, -1).astype(jnp.float32)

    # Batch tiling: multiple of 16 (bf16 sublane packing), large tiles, and
    # >= 2 grid steps when B allows so the parallel axis spans both v7x TCs.
    if block_b is None:
        b16 = _round_up(B, 16)
        block_b = min(2048, max(16, _round_up((b16 + 1) // 2, 16)))
    else:
        block_b = _round_up(block_b, 16)
    b_pad = _round_up(B, block_b)
    if b_pad != B:
        x = jnp.pad(x, ((0, b_pad - B), (0, 0)))
    n_tiles = b_pad // block_b

    in_specs = [
        pl.BlockSpec((block_b, in_dim), lambda i: (i, 0)),   # streamed x tile
        pl.BlockSpec((in_dim, hidden), lambda i: (0, 0)),    # resident W1
        pl.BlockSpec((1, hidden), lambda i: (0, 0)),         # resident b1
        pl.BlockSpec((hidden, out_p), lambda i: (0, 0)),     # resident W2
        pl.BlockSpec((1, out_p), lambda i: (0, 0)),          # resident b_out
    ]
    out_spec = pl.BlockSpec((block_b, out_p), lambda i: (i, 0))

    out_padded = pl.pallas_call(
        _fc_head_kernel,
        out_shape=jax.ShapeDtypeStruct((b_pad, out_p), jnp.float32),
        grid=(n_tiles,),
        in_specs=in_specs,
        out_specs=out_spec,
        compiler_params=pltpu.CompilerParams(
            dimension_semantics=("parallel",),
        ),
    )(x, w1_b, b1_2d, w2_b, b_out_p)

    # Padded batch rows / lanes contain garbage; always slice.
    return out_padded[:B, :out_dim]


def init_params(key, in_dim, hidden=1024, out_dim=10):
    """Deterministic synthetic params mimicking the module's init:
    Linear default init for layer 0, xavier_uniform_(gain=0.02) for layer 2."""
    k1, k2, k3, k4, k5 = jax.random.split(key, 5)
    s1 = 1.0 / jnp.sqrt(jnp.float32(in_dim))
    w1 = jax.random.uniform(k1, (in_dim, hidden), jnp.float32, -s1, s1)
    b1 = jax.random.uniform(k2, (hidden,), jnp.float32, -s1, s1)
    xav = 0.02 * jnp.sqrt(6.0 / jnp.float32(hidden + out_dim))
    w2 = jax.random.uniform(k3, (hidden, out_dim), jnp.float32, -xav, xav)
    s2 = 1.0 / jnp.sqrt(jnp.float32(hidden))
    b2 = jax.random.uniform(k4, (out_dim,), jnp.float32, -s2, s2)
    # TODO(synk): real init_betas comes from data/smpl_mean_params.npz['shape'];
    # synthesized deterministically here (no file I/O allowed in-script).
    init_betas = 0.1 * jax.random.normal(k5, (1, out_dim), jnp.float32)
    return w1, b1, w2, b2, init_betas


if __name__ == "__main__":
    key = jax.random.PRNGKey(0)
    k_f, k_p, k_w = jax.random.split(key, 3)

    B = 8
    IN_DIM = 32          # backbone feature dim (small for test)
    POSE_DIM = 144
    HIDDEN = 1024        # fixed by the module
    OUT_DIM = 10         # fixed by the module
    CONDITION_ON_POSE = True
    TOTAL_IN = IN_DIM + POSE_DIM if CONDITION_ON_POSE else IN_DIM

    feats = jax.random.normal(k_f, (B, IN_DIM), jnp.float32)
    pred_pose = jax.random.normal(k_p, (B, POSE_DIM), jnp.float32)
    w1, b1, w2, b2, init_betas = init_params(k_w, TOTAL_IN, HIDDEN, OUT_DIM)

    out = fc_head_beta_forward(feats, pred_pose, w1, b1, w2, b2, init_betas,
                               condition_on_pose=CONDITION_ON_POSE)
    out = jax.block_until_ready(out)

    # Pure-JAX f32 reference of the forward semantics (kernel runs in bf16 on
    # the MXU with f32 accumulation, so tolerances are relaxed accordingly).
    x_cat = jnp.concatenate([feats, pred_pose], axis=-1)
    h_ref = jnp.maximum(
        jnp.dot(x_cat, w1, precision=jax.lax.Precision.HIGHEST) + b1, 0.0)
    ref = jnp.dot(h_ref, w2, precision=jax.lax.Precision.HIGHEST) + b2 + init_betas

    assert out.shape == (B, OUT_DIM), out.shape
    assert jnp.allclose(out, ref, atol=2e-2, rtol=2e-2), \
        float(jnp.max(jnp.abs(out - ref)))

    print("KERNEL_OK")
</pallas_src>

<mosaic_0001>
module attributes {stable_mosaic.version = 11 : i64} {
  func.func @_fc_head_kernel(%arg0: i32, %arg1: memref<16x176xbf16, #tpu.memory_space<vmem>>, %arg2: memref<176x1024xbf16, #tpu.memory_space<vmem>>, %arg3: memref<1x1024xf32, #tpu.memory_space<vmem>>, %arg4: memref<1024x128xbf16, #tpu.memory_space<vmem>>, %arg5: memref<1x128xf32, #tpu.memory_space<vmem>>, %arg6: memref<16x128xf32, #tpu.memory_space<vmem>>) attributes {dimension_semantics = [#tpu.dimension_semantics<parallel>], iteration_bounds = array<i64: 1>, scalar_prefetch = 0 : i64, scratch_operands = 0 : i64, tpu.core_type = #tpu.core_type<tc>, window_params = [{transform_indices = @transform_0, window_bounds = array<i64: 16, 176>}, {pipeline_mode = #tpu.pipeline_mode<synchronous>, transform_indices = @transform_1, window_bounds = array<i64: 176, 1024>}, {pipeline_mode = #tpu.pipeline_mode<synchronous>, transform_indices = @transform_2, window_bounds = array<i64: 1, 1024>}, {pipeline_mode = #tpu.pipeline_mode<synchronous>, transform_indices = @transform_3, window_bounds = array<i64: 1024, 128>}, {pipeline_mode = #tpu.pipeline_mode<synchronous>, transform_indices = @transform_4, window_bounds = array<i64: 1, 128>}, {transform_indices = @transform_5, window_bounds = array<i64: 16, 128>}]} {
    %c0 = arith.constant 0 : index
    %c0_0 = arith.constant 0 : index
    %0 = vector.load %arg1[%c0, %c0_0] : memref<16x176xbf16, #tpu.memory_space<vmem>>, vector<16x176xbf16>
    %c0_1 = arith.constant 0 : index
    %c0_2 = arith.constant 0 : index
    %1 = vector.load %arg2[%c0_1, %c0_2] : memref<176x1024xbf16, #tpu.memory_space<vmem>>, vector<176x1024xbf16>
    %cst = arith.constant dense<0.000000e+00> : vector<16x1024xf32>
    %2 = tpu.matmul %0, %1, %cst {dimension_numbers = #tpu.dot_dimension_numbers<[1], [0], [0], [1], [0, 0, 1, 1], [], []>} : vector<16x176xbf16>, vector<176x1024xbf16>, vector<16x1024xf32> -> vector<16x1024xf32>
    %c0_3 = arith.constant 0 : index
    %c0_4 = arith.constant 0 : index
    %3 = vector.load %arg3[%c0_3, %c0_4] : memref<1x1024xf32, #tpu.memory_space<vmem>>, vector<1x1024xf32>
    %4 = vector.broadcast %3 : vector<1x1024xf32> to vector<16x1024xf32>
    %5 = arith.addf %2, %4 : vector<16x1024xf32>
    %cst_5 = arith.constant 0.000000e+00 : f32
    %6 = vector.broadcast %cst_5 : f32 to vector<16x1024xf32>
    %7 = arith.maximumf %5, %6 : vector<16x1024xf32>
    %8 = arith.truncf %7 : vector<16x1024xf32> to vector<16x1024xbf16>
    %c0_6 = arith.constant 0 : index
    %c0_7 = arith.constant 0 : index
    %9 = vector.load %arg4[%c0_6, %c0_7] : memref<1024x128xbf16, #tpu.memory_space<vmem>>, vector<1024x128xbf16>
    %cst_8 = arith.constant dense<0.000000e+00> : vector<16x128xf32>
    %10 = tpu.matmul %8, %9, %cst_8 {dimension_numbers = #tpu.dot_dimension_numbers<[1], [0], [0], [1], [0, 0, 1, 1], [], []>} : vector<16x1024xbf16>, vector<1024x128xbf16>, vector<16x128xf32> -> vector<16x128xf32>
    %c0_9 = arith.constant 0 : index
    %c0_10 = arith.constant 0 : index
    %11 = vector.load %arg5[%c0_9, %c0_10] : memref<1x128xf32, #tpu.memory_space<vmem>>, vector<1x128xf32>
    %12 = vector.broadcast %11 : vector<1x128xf32> to vector<16x128xf32>
    %13 = arith.addf %10, %12 : vector<16x128xf32>
    %c0_11 = arith.constant 0 : index
    %c0_12 = arith.constant 0 : index
    %14 = vector.load %arg6[%c0_11, %c0_12] : memref<16x128xf32, #tpu.memory_space<vmem>>, vector<16x128xf32>
    tpu.vector_store %arg6[%c0_11, %c0_12], %13 {strides = array<i32>} : memref<16x128xf32, #tpu.memory_space<vmem>>, vector<16x128xf32>,
    return
  }
  func.func @transform_0(%arg0: i32) -> (i32, i32) {
    %c0_i32 = arith.constant 0 : i32
    %c0_i32_0 = arith.constant 0 : i32
    return %arg0, %c0_i32 : i32, i32
  }
  func.func @transform_1(%arg0: i32) -> (i32, i32) {
    %c0_i32 = arith.constant 0 : i32
    %c0_i32_0 = arith.constant 0 : i32
    %c0_i32_1 = arith.constant 0 : i32
    return %c0_i32, %c0_i32_0 : i32, i32
  }
  func.func @transform_2(%arg0: i32) -> (i32, i32) {
    %c0_i32 = arith.constant 0 : i32
    %c0_i32_0 = arith.constant 0 : i32
    %c0_i32_1 = arith.constant 0 : i32
    return %c0_i32, %c0_i32_0 : i32, i32
  }
  func.func @transform_3(%arg0: i32) -> (i32, i32) {
    %c0_i32 = arith.constant 0 : i32
    %c0_i32_0 = arith.constant 0 : i32
    %c0_i32_1 = arith.constant 0 : i32
    return %c0_i32, %c0_i32_0 : i32, i32
  }
  func.func @transform_4(%arg0: i32) -> (i32, i32) {
    %c0_i32 = arith.constant 0 : i32
    %c0_i32_0 = arith.constant 0 : i32
    %c0_i32_1 = arith.constant 0 : i32
    return %c0_i32, %c0_i32_0 : i32, i32
  }
  func.func @transform_5(%arg0: i32) -> (i32, i32) {
    %c0_i32 = arith.constant 0 : i32
    %c0_i32_0 = arith.constant 0 : i32
    return %arg0, %c0_i32 : i32, i32
  }
}

</mosaic_0001>

<llo_original>
// kernel: tpu_custom_call.1
$region0: #{tpu_custom_call.1}
  #allocation0 [shape = 'u32[]', space=smem, size = 0x4, offset = 0x4, fixed_abs, tag = 'smem constant byte address 0x4 - core index']
  #allocation1 [shape = 'u32[144,128]{1,0:T(1,128)}', space=vmem, size = 0x12000, scoped, tag = 'internal scratch']
  %s0 = inlined_call_operand.hbm [shape: bf16[16,176], index: 0, kind: input, shape index: {}]
  %s1 = inlined_call_operand.hbm [shape: bf16[176,1024], index: 1, kind: input, shape index: {}]
  %s2 = inlined_call_operand.hbm [shape: f32[1,1024], index: 2, kind: input, shape index: {}]
  %s3 = inlined_call_operand.hbm [shape: bf16[1024,128], index: 3, kind: input, shape index: {}]
  %s4 = inlined_call_operand.vmem [shape: f32[1,128], index: 4, kind: input, shape index: {}]
  %s5 = inlined_call_operand.hbm [shape: f32[16,128], index: 5, kind: output, shape index: {}]
  %s6 = sld [smem:[#allocation0]]
  $region46: #{tpu_custom_call.1} parent=0
    _
  %s8 = ssub.s32 1, %s6
  %s9 = scalar_select 0, %s8, %s6
  $region1: #{tpu_custom_call.1} parent=0
    #allocation2 [shape = 'u8[8192]{0}', space=vmem, size = 0x2000, scoped, tag = 'input window, operand 0, single buffered']
    #allocation3 [shape = 's32[1]{0}', space=sflag, size = 0x4, scoped, tag = 'scoped memory for tpu_custom_call.1']
    #allocation4 [shape = 's32[1]{0}', space=sflag, size = 0x4, scoped, tag = 'scoped memory for tpu_custom_call.1']
    #allocation5 [shape = 'u8[360448]{0}', space=vmem, size = 0x58000, scoped, tag = 'input window, operand 1, single buffered']
    #allocation6 [shape = 's32[1]{0}', space=sflag, size = 0x4, scoped, tag = 'scoped memory for tpu_custom_call.1']
    #allocation7 [shape = 'u8[4096]{0}', space=vmem, size = 0x1000, scoped, tag = 'input window, operand 2, single buffered']
    #allocation8 [shape = 'u8[262144]{0}', space=vmem, size = 0x40000, scoped, tag = 'input window, operand 3, single buffered']
    #allocation9 [shape = 's32[1]{0}', space=sflag, size = 0x4, scoped, tag = 'scoped memory for tpu_custom_call.1']
    #allocation10 [shape = 'u8[8192]{0}', space=vmem, size = 0x2000, scoped, tag = 'output window, operand 0, single buffered']
    %10 = vsyncpa [#allocation3], 0
    %11 = vsyncpa [#allocation6], 0
    %12 = vsyncpa [#allocation9], 0
    %13 = vsyncpa [#allocation4], 0
    // Predicated region
    $region2: #{tpu_custom_call.1} parent=1 // pred_check
      _
    $region3: #{tpu_custom_call.1} parent=1 // pred_check_branch
      %15 = sbr.rel (0) target = $region5
    $region4: #{tpu_custom_call.1} parent=1 // pred_region
      %s17 = ssub.s32 256, 256
      %18 = vsyncadd [#allocation3], %s17
      %s19 = sshll.u32 [#allocation2], 4
      %s20 = int_to_ptr.vmem [resolvable:$true] %s19
      %25 = dma.hbm_to_vmem [thread:$0]  %s0, 256, %s20, [#allocation3], 128, 128, 8
    $region5: #{tpu_custom_call.1} parent=1 // pred_fallthru
      _
    // Predicated region
    $region6: #{tpu_custom_call.1} parent=1 // pred_check
      _
    $region7: #{tpu_custom_call.1} parent=1 // pred_check_branch
      %27 = sbr.rel (0) target = $region9
    $region8: #{tpu_custom_call.1} parent=1 // pred_region
      %s29 = ssub.s32 11264, 11264
      %30 = vsyncadd [#allocation6], %s29
      %s31 = sshll.u32 [#allocation5], 4
      %s32 = int_to_ptr.vmem [resolvable:$true] %s31
      %37 = dma.hbm_to_vmem [thread:$0]  %s1, 11264, %s32, [#allocation6], 512, 512, 32
    $region9: #{tpu_custom_call.1} parent=1 // pred_fallthru
      _
    // Predicated region
    $region10: #{tpu_custom_call.1} parent=1 // pred_check
      _
    $region11: #{tpu_custom_call.1} parent=1 // pred_check_branch
      %39 = sbr.rel (0) target = $region13
    $region12: #{tpu_custom_call.1} parent=1 // pred_region
      %s41 = ssub.s32 128, 128
      %42 = vsyncadd [#allocation6], %s41
      %s44 = sshll.u32 [#allocation7], 4
      %s45 = int_to_ptr.vmem [resolvable:$true] %s44
      %47 = dma.hbm_to_vmem [thread:$0]  %s2, 128, %s45, [#allocation6]
    $region13: #{tpu_custom_call.1} parent=1 // pred_fallthru
      _
    // Predicated region
    $region14: #{tpu_custom_call.1} parent=1 // pred_check
      _
    $region15: #{tpu_custom_call.1} parent=1 // pred_check_branch
      %49 = sbr.rel (0) target = $region17
    $region16: #{tpu_custom_call.1} parent=1 // pred_region
      %s51 = ssub.s32 8192, 8192
      %52 = vsyncadd [#allocation9], %s51
      %s53 = sshll.u32 [#allocation8], 4
      %s54 = int_to_ptr.vmem [resolvable:$true] %s53
      %59 = dma.hbm_to_vmem [thread:$0]  %s3, 8192, %s54, [#allocation9], 64, 64, 4
    $region17: #{tpu_custom_call.1} parent=1 // pred_fallthru
      _
    // Predicated region
    $region18: #{tpu_custom_call.1} parent=1 // pred_check
      _
    $region19: #{tpu_custom_call.1} parent=1 // pred_check_branch
      %61 = sbr.rel (0) target = $region21
    $region20: #{tpu_custom_call.1} parent=1 // pred_region
      _
    $region21: #{tpu_custom_call.1} parent=1 // pred_fallthru
      _
    // Predicated region
    $region22: #{tpu_custom_call.1} parent=1 // pred_check
      _
    $region23: #{tpu_custom_call.1} parent=1 // pred_check_branch
      %63 = sbr.rel (0) target = $region25
    $region24: #{tpu_custom_call.1} parent=1 // pred_region
      %64 = dma.done [#allocation3], 256
    $region25: #{tpu_custom_call.1} parent=1 // pred_fallthru
      _
    // Predicated region
    $region26: #{tpu_custom_call.1} parent=1 // pred_check
      _
    $region27: #{tpu_custom_call.1} parent=1 // pred_check_branch
      %66 = sbr.rel (0) target = $region29
    $region28: #{tpu_custom_call.1} parent=1 // pred_region
      %67 = dma.done [#allocation6], 11264
    $region29: #{tpu_custom_call.1} parent=1 // pred_fallthru
      _
    // Predicated region
    $region30: #{tpu_custom_call.1} parent=1 // pred_check
      _
    $region31: #{tpu_custom_call.1} parent=1 // pred_check_branch
      %69 = sbr.rel (0) target = $region33
    $region32: #{tpu_custom_call.1} parent=1 // pred_region
      %70 = dma.done [#allocation6], 128
    $region33: #{tpu_custom_call.1} parent=1 // pred_fallthru
      _
    // Predicated region
    $region34: #{tpu_custom_call.1} parent=1 // pred_check
      _
    $region35: #{tpu_custom_call.1} parent=1 // pred_check_branch
      %72 = sbr.rel (0) target = $region37
    $region36: #{tpu_custom_call.1} parent=1 // pred_region
      %73 = dma.done [#allocation9], 8192
    $region37: #{tpu_custom_call.1} parent=1 // pred_fallthru
      _
    %v75 = vld [vmem:[#allocation2] sm:$0xff]
    %v76 = vld [vmem:[#allocation2 + $0x8] sm:$0xff]
    %v77 = vld [vmem:[#allocation5] sm:$0xff]
    %v78 = vld [vmem:[#allocation5 + $0x8] sm:$0xff]
    %v79 = vld [vmem:[#allocation5 + $0x10] sm:$0xff]
    %v80 = vld [vmem:[#allocation5 + $0x18] sm:$0xff]
    %v81 = vld [vmem:[#allocation5 + $0x20] sm:$0xff]
    %v82 = vld [vmem:[#allocation5 + $0x28] sm:$0xff]
    %v83 = vld [vmem:[#allocation5 + $0x30] sm:$0xff]
    %v84 = vld [vmem:[#allocation5 + $0x38] sm:$0xff]
    %v85 = vld [vmem:[#allocation5 + $0x40] sm:$0xff]
    %v86 = vld [vmem:[#allocation5 + $0x48] sm:$0xff]
    %v87 = vld [vmem:[#allocation5 + $0x50] sm:$0xff]
    %v88 = vld [vmem:[#allocation5 + $0x58] sm:$0xff]
    %v89 = vld [vmem:[#allocation5 + $0x60] sm:$0xff]
    %v90 = vld [vmem:[#allocation5 + $0x68] sm:$0xff]
    %v91 = vld [vmem:[#allocation5 + $0x70] sm:$0xff]
    %v92 = vld [vmem:[#allocation5 + $0x78] sm:$0xff]
    %v93 = vld [vmem:[#allocation5 + $0x80] sm:$0xff]
    %v94 = vld [vmem:[#allocation5 + $0x88] sm:$0xff]
    %v95 = vld [vmem:[#allocation5 + $0x90] sm:$0xff]
    %v96 = vld [vmem:[#allocation5 + $0x98] sm:$0xff]
    %v97 = vld [vmem:[#allocation5 + $0xa0] sm:$0xff]
    %v98 = vld [vmem:[#allocation5 + $0xa8] sm:$0xff]
    %v99 = vld [vmem:[#allocation5 + $0xb0] sm:$0xff]
    %v100 = vld [vmem:[#allocation5 + $0xb8] sm:$0xff]
    %v101 = vld [vmem:[#allocation5 + $0xc0] sm:$0xff]
    %v102 = vld [vmem:[#allocation5 + $0xc8] sm:$0xff]
    %v103 = vld [vmem:[#allocation5 + $0xd0] sm:$0xff]
    %v104 = vld [vmem:[#allocation5 + $0xd8] sm:$0xff]
    %v105 = vld [vmem:[#allocation5 + $0xe0] sm:$0xff]
    %v106 = vld [vmem:[#allocation5 + $0xe8] sm:$0xff]
    %v107 = vld [vmem:[#allocation5 + $0xf0] sm:$0xff]
    %v108 = vld [vmem:[#allocation5 + $0xf8] sm:$0xff]
    %v109 = vld [vmem:[#allocation5 + $0x100] sm:$0xff]
    %v110 = vld [vmem:[#allocation5 + $0x108] sm:$0xff]
    %v111 = vld [vmem:[#allocation5 + $0x110] sm:$0xff]
    %v112 = vld [vmem:[#allocation5 + $0x118] sm:$0xff]
    %v113 = vld [vmem:[#allocation5 + $0x120] sm:$0xff]
    %v114 = vld [vmem:[#allocation5 + $0x128] sm:$0xff]
    %v115 = vld [vmem:[#allocation5 + $0x130] sm:$0xff]
    %v116 = vld [vmem:[#allocation5 + $0x138] sm:$0xff]
    %v117 = vld [vmem:[#allocation5 + $0x140] sm:$0xff]
    %v118 = vld [vmem:[#allocation5 + $0x148] sm:$0xff]
    %v119 = vld [vmem:[#allocation5 + $0x150] sm:$0xff]
    %v120 = vld [vmem:[#allocation5 + $0x158] sm:$0xff]
    %v121 = vld [vmem:[#allocation5 + $0x160] sm:$0xff]
    %v122 = vld [vmem:[#allocation5 + $0x168] sm:$0xff]
    %v123 = vld [vmem:[#allocation5 + $0x170] sm:$0xff]
    %v124 = vld [vmem:[#allocation5 + $0x178] sm:$0xff]
    %v125 = vld [vmem:[#allocation5 + $0x180] sm:$0xff]
    %v126 = vld [vmem:[#allocation5 + $0x188] sm:$0xff]
    %v127 = vld [vmem:[#allocation5 + $0x190] sm:$0xff]
    %v128 = vld [vmem:[#allocation5 + $0x198] sm:$0xff]
    %v129 = vld [vmem:[#allocation5 + $0x1a0] sm:$0xff]
    %v130 = vld [vmem:[#allocation5 + $0x1a8] sm:$0xff]
    %v131 = vld [vmem:[#allocation5 + $0x1b0] sm:$0xff]
    %v132 = vld [vmem:[#allocation5 + $0x1b8] sm:$0xff]
    %v133 = vld [vmem:[#allocation5 + $0x1c0] sm:$0xff]
    %v134 = vld [vmem:[#allocation5 + $0x1c8] sm:$0xff]
    %v135 = vld [vmem:[#allocation5 + $0x1d0] sm:$0xff]
    %v136 = vld [vmem:[#allocation5 + $0x1d8] sm:$0xff]
    %v137 = vld [vmem:[#allocation5 + $0x1e0] sm:$0xff]
    %v138 = vld [vmem:[#allocation5 + $0x1e8] sm:$0xff]
    %v139 = vld [vmem:[#allocation5 + $0x1f0] sm:$0xff]
    %v140 = vld [vmem:[#allocation5 + $0x1f8] sm:$0xff]
    %v141 = vld [vmem:[#allocation5 + $0x200] sm:$0xff]
    %v142 = vld [vmem:[#allocation5 + $0x208] sm:$0xff]
    %v143 = vld [vmem:[#allocation5 + $0x210] sm:$0xff]
    %v144 = vld [vmem:[#allocation5 + $0x218] sm:$0xff]
    %v145 = vld [vmem:[#allocation5 + $0x220] sm:$0xff]
    %v146 = vld [vmem:[#allocation5 + $0x228] sm:$0xff]
    %v147 = vld [vmem:[#allocation5 + $0x230] sm:$0xff]
    %v148 = vld [vmem:[#allocation5 + $0x238] sm:$0xff]
    %v149 = vld [vmem:[#allocation5 + $0x240] sm:$0xff]
    %v150 = vld [vmem:[#allocation5 + $0x248] sm:$0xff]
    %v151 = vld [vmem:[#allocation5 + $0x250] sm:$0xff]
    %v152 = vld [vmem:[#allocation5 + $0x258] sm:$0xff]
    %v153 = vld [vmem:[#allocation5 + $0x260] sm:$0xff]
    %v154 = vld [vmem:[#allocation5 + $0x268] sm:$0xff]
    %v155 = vld [vmem:[#allocation5 + $0x270] sm:$0xff]
    %v156 = vld [vmem:[#allocation5 + $0x278] sm:$0xff]
    %v157 = vld [vmem:[#allocation5 + $0x280] sm:$0xff]
    %v158 = vld [vmem:[#allocation5 + $0x288] sm:$0xff]
    %v159 = vld [vmem:[#allocation5 + $0x290] sm:$0xff]
    %v160 = vld [vmem:[#allocation5 + $0x298] sm:$0xff]
    %v161 = vld [vmem:[#allocation5 + $0x2a0] sm:$0xff]
    %v162 = vld [vmem:[#allocation5 + $0x2a8] sm:$0xff]
    %v163 = vld [vmem:[#allocation5 + $0x2b0] sm:$0xff]
    %v164 = vld [vmem:[#allocation5 + $0x2b8] sm:$0xff]
    %v165 = vld [vmem:[#allocation7] sm:$0xff]
    %v167 = vlaneseq
    %v168 = vshrl.u32 %v167, 7
    %v169 = vsub.s32 0, %v168
    %v170 = vrot.slane %v165, %v169
    %v171 = vlaneseq
    %v172 = vshrl.u32 %v171, 7
    %v173 = vsub.s32 1, %v172
    %v174 = vrot.slane %v165, %v173
    %v175 = vlaneseq
    %v176 = vshrl.u32 %v175, 7
    %v177 = vsub.s32 2, %v176
    %v178 = vrot.slane %v165, %v177
    %v179 = vlaneseq
    %v180 = vshrl.u32 %v179, 7
    %v181 = vsub.s32 3, %v180
    %v182 = vrot.slane %v165, %v181
    %v183 = vlaneseq
    %v184 = vshrl.u32 %v183, 7
    %v185 = vsub.s32 4, %v184
    %v186 = vrot.slane %v165, %v185
    %v187 = vlaneseq
    %v188 = vshrl.u32 %v187, 7
    %v189 = vsub.s32 5, %v188
    %v190 = vrot.slane %v165, %v189
    %v191 = vlaneseq
    %v192 = vshrl.u32 %v191, 7
    %v193 = vsub.s32 6, %v192
    %v194 = vrot.slane %v165, %v193
    %v195 = vlaneseq
    %v196 = vshrl.u32 %v195, 7
    %v197 = vsub.s32 7, %v196
    %v198 = vrot.slane %v165, %v197
    %v209 = vunpack.c.l.b16 %v75
    %v210 = vunpack.c.h.b16 %v75
    %v211 = vunpack.c.l.b16 %v76
    %v212 = vunpack.c.h.b16 %v76
    %v213 = vpack.c.b16 %v211, %v209
    %v214 = vpack.c.b16 %v212, %v210
    %v304 = vunpack.c.l.b16 %v77
    %v305 = vunpack.c.h.b16 %v77
    %v306 = vunpack.c.l.b16 %v78
    %v307 = vunpack.c.h.b16 %v78
    %v308 = vunpack.c.l.b16 %v79
    %v309 = vunpack.c.h.b16 %v79
    %v310 = vunpack.c.l.b16 %v80
    %v311 = vunpack.c.h.b16 %v80
    %v312 = vunpack.c.l.b16 %v81
    %v313 = vunpack.c.h.b16 %v81
    %v314 = vunpack.c.l.b16 %v82
    %v315 = vunpack.c.h.b16 %v82
    %v316 = vunpack.c.l.b16 %v83
    %v317 = vunpack.c.h.b16 %v83
    %v318 = vunpack.c.l.b16 %v84
    %v319 = vunpack.c.h.b16 %v84
    %v320 = vunpack.c.l.b16 %v85
    %v321 = vunpack.c.h.b16 %v85
    %v322 = vunpack.c.l.b16 %v86
    %v323 = vunpack.c.h.b16 %v86
    %v324 = vunpack.c.l.b16 %v87
    %v325 = vunpack.c.h.b16 %v87
    %v326 = vunpack.c.l.b16 %v88
    %v327 = vunpack.c.h.b16 %v88
    %v328 = vunpack.c.l.b16 %v89
    %v329 = vunpack.c.h.b16 %v89
    %v330 = vunpack.c.l.b16 %v90
    %v331 = vunpack.c.h.b16 %v90
    %v332 = vunpack.c.l.b16 %v91
    %v333 = vunpack.c.h.b16 %v91
    %v334 = vunpack.c.l.b16 %v92
    %v335 = vunpack.c.h.b16 %v92
    %v336 = vunpack.c.l.b16 %v93
    %v337 = vunpack.c.h.b16 %v93
    %v338 = vunpack.c.l.b16 %v94
    %v339 = vunpack.c.h.b16 %v94
    %v340 = vunpack.c.l.b16 %v95
    %v341 = vunpack.c.h.b16 %v95
    %v342 = vunpack.c.l.b16 %v96
    %v343 = vunpack.c.h.b16 %v96
    %v344 = vunpack.c.l.b16 %v97
    %v345 = vunpack.c.h.b16 %v97
    %v346 = vunpack.c.l.b16 %v98
    %v347 = vunpack.c.h.b16 %v98
    %v348 = vunpack.c.l.b16 %v99
    %v349 = vunpack.c.h.b16 %v99
    %v350 = vunpack.c.l.b16 %v100
    %v351 = vunpack.c.h.b16 %v100
    %v352 = vunpack.c.l.b16 %v101
    %v353 = vunpack.c.h.b16 %v101
    %v354 = vunpack.c.l.b16 %v102
    %v355 = vunpack.c.h.b16 %v102
    %v356 = vunpack.c.l.b16 %v103
    %v357 = vunpack.c.h.b16 %v103
    %v358 = vunpack.c.l.b16 %v104
    %v359 = vunpack.c.h.b16 %v104
    %v360 = vunpack.c.l.b16 %v105
    %v361 = vunpack.c.h.b16 %v105
    %v362 = vunpack.c.l.b16 %v106
    %v363 = vunpack.c.h.b16 %v106
    %v364 = vunpack.c.l.b16 %v107
    %v365 = vunpack.c.h.b16 %v107
    %v366 = vunpack.c.l.b16 %v108
    %v367 = vunpack.c.h.b16 %v108
    %v368 = vunpack.c.l.b16 %v109
    %v369 = vunpack.c.h.b16 %v109
    %v370 = vunpack.c.l.b16 %v110
    %v371 = vunpack.c.h.b16 %v110
    %v372 = vunpack.c.l.b16 %v111
    %v373 = vunpack.c.h.b16 %v111
    %v374 = vunpack.c.l.b16 %v112
    %v375 = vunpack.c.h.b16 %v112
    %v376 = vunpack.c.l.b16 %v113
    %v377 = vunpack.c.h.b16 %v113
    %v378 = vunpack.c.l.b16 %v114
    %v379 = vunpack.c.h.b16 %v114
    %v380 = vunpack.c.l.b16 %v115
    %v381 = vunpack.c.h.b16 %v115
    %v382 = vunpack.c.l.b16 %v116
    %v383 = vunpack.c.h.b16 %v116
    %v384 = vunpack.c.l.b16 %v117
    %v385 = vunpack.c.h.b16 %v117
    %v386 = vunpack.c.l.b16 %v118
    %v387 = vunpack.c.h.b16 %v118
    %v388 = vunpack.c.l.b16 %v119
    %v389 = vunpack.c.h.b16 %v119
    %v390 = vunpack.c.l.b16 %v120
    %v391 = vunpack.c.h.b16 %v120
    %v392 = vunpack.c.l.b16 %v121
    %v393 = vunpack.c.h.b16 %v121
    %v394 = vunpack.c.l.b16 %v122
    %v395 = vunpack.c.h.b16 %v122
    %v396 = vunpack.c.l.b16 %v123
    %v397 = vunpack.c.h.b16 %v123
    %v398 = vunpack.c.l.b16 %v124
    %v399 = vunpack.c.h.b16 %v124
    %v400 = vunpack.c.l.b16 %v125
    %v401 = vunpack.c.h.b16 %v125
    %v402 = vunpack.c.l.b16 %v126
    %v403 = vunpack.c.h.b16 %v126
    %v404 = vunpack.c.l.b16 %v127
    %v405 = vunpack.c.h.b16 %v127
    %v406 = vunpack.c.l.b16 %v128
    %v407 = vunpack.c.h.b16 %v128
    %v408 = vunpack.c.l.b16 %v129
    %v409 = vunpack.c.h.b16 %v129
    %v410 = vunpack.c.l.b16 %v130
    %v411 = vunpack.c.h.b16 %v130
    %v412 = vunpack.c.l.b16 %v131
    %v413 = vunpack.c.h.b16 %v131
    %v414 = vunpack.c.l.b16 %v132
    %v415 = vunpack.c.h.b16 %v132
    %v416 = vunpack.c.l.b16 %v133
    %v417 = vunpack.c.h.b16 %v133
    %v418 = vunpack.c.l.b16 %v134
    %v419 = vunpack.c.h.b16 %v134
    %v420 = vunpack.c.l.b16 %v135
    %v421 = vunpack.c.h.b16 %v135
    %v422 = vunpack.c.l.b16 %v136
    %v423 = vunpack.c.h.b16 %v136
    %v424 = vunpack.c.l.b16 %v137
    %v425 = vunpack.c.h.b16 %v137
    %v426 = vunpack.c.l.b16 %v138
    %v427 = vunpack.c.h.b16 %v138
    %v428 = vunpack.c.l.b16 %v139
    %v429 = vunpack.c.h.b16 %v139
    %v430 = vunpack.c.l.b16 %v140
    %v431 = vunpack.c.h.b16 %v140
    %v432 = vunpack.c.l.b16 %v141
    %v433 = vunpack.c.h.b16 %v141
    %v434 = vunpack.c.l.b16 %v142
    %v435 = vunpack.c.h.b16 %v142
    %v436 = vunpack.c.l.b16 %v143
    %v437 = vunpack.c.h.b16 %v143
    %v438 = vunpack.c.l.b16 %v144
    %v439 = vunpack.c.h.b16 %v144
    %v440 = vunpack.c.l.b16 %v145
    %v441 = vunpack.c.h.b16 %v145
    %v442 = vunpack.c.l.b16 %v146
    %v443 = vunpack.c.h.b16 %v146
    %v444 = vunpack.c.l.b16 %v147
    %v445 = vunpack.c.h.b16 %v147
    %v446 = vunpack.c.l.b16 %v148
    %v447 = vunpack.c.h.b16 %v148
    %v448 = vunpack.c.l.b16 %v149
    %v449 = vunpack.c.h.b16 %v149
    %v450 = vunpack.c.l.b16 %v150
    %v451 = vunpack.c.h.b16 %v150
    %v452 = vunpack.c.l.b16 %v151
    %v453 = vunpack.c.h.b16 %v151
    %v454 = vunpack.c.l.b16 %v152
    %v455 = vunpack.c.h.b16 %v152
    %v456 = vunpack.c.l.b16 %v153
    %v457 = vunpack.c.h.b16 %v153
    %v458 = vunpack.c.l.b16 %v154
    %v459 = vunpack.c.h.b16 %v154
    %v460 = vunpack.c.l.b16 %v155
    %v461 = vunpack.c.h.b16 %v155
    %v462 = vunpack.c.l.b16 %v156
    %v463 = vunpack.c.h.b16 %v156
    %v464 = vunpack.c.l.b16 %v157
    %v465 = vunpack.c.h.b16 %v157
    %v466 = vunpack.c.l.b16 %v158
    %v467 = vunpack.c.h.b16 %v158
    %v468 = vunpack.c.l.b16 %v159
    %v469 = vunpack.c.h.b16 %v159
    %v470 = vunpack.c.l.b16 %v160
    %v471 = vunpack.c.h.b16 %v160
    %v472 = vunpack.c.l.b16 %v161
    %v473 = vunpack.c.h.b16 %v161
    %v474 = vunpack.c.l.b16 %v162
    %v475 = vunpack.c.h.b16 %v162
    %v476 = vunpack.c.l.b16 %v163
    %v477 = vunpack.c.h.b16 %v163
    %v478 = vunpack.c.l.b16 %v164
    %v479 = vunpack.c.h.b16 %v164
    %v480 = vpack.c.b16 %v312, %v304
    %v481 = vpack.c.b16 %v313, %v305
    %v482 = vpack.c.b16 %v314, %v306
    %v483 = vpack.c.b16 %v315, %v307
    %v484 = vpack.c.b16 %v316, %v308
    %v485 = vpack.c.b16 %v317, %v309
    %v486 = vpack.c.b16 %v318, %v310
    %v487 = vpack.c.b16 %v319, %v311
    %v488 = vpack.c.b16 %v328, %v320
    %v489 = vpack.c.b16 %v329, %v321
    %v490 = vpack.c.b16 %v330, %v322
    %v491 = vpack.c.b16 %v331, %v323
    %v492 = vpack.c.b16 %v332, %v324
    %v493 = vpack.c.b16 %v333, %v325
    %v494 = vpack.c.b16 %v334, %v326
    %v495 = vpack.c.b16 %v335, %v327
    %v496 = vpack.c.b16 %v344, %v336
    %v497 = vpack.c.b16 %v345, %v337
    %v498 = vpack.c.b16 %v346, %v338
    %v499 = vpack.c.b16 %v347, %v339
    %v500 = vpack.c.b16 %v348, %v340
    %v501 = vpack.c.b16 %v349, %v341
    %v502 = vpack.c.b16 %v350, %v342
    %v503 = vpack.c.b16 %v351, %v343
    %v504 = vpack.c.b16 %v360, %v352
    %v505 = vpack.c.b16 %v361, %v353
    %v506 = vpack.c.b16 %v362, %v354
    %v507 = vpack.c.b16 %v363, %v355
    %v508 = vpack.c.b16 %v364, %v356
    %v509 = vpack.c.b16 %v365, %v357
    %v510 = vpack.c.b16 %v366, %v358
    %v511 = vpack.c.b16 %v367, %v359
    %v512 = vpack.c.b16 %v376, %v368
    %v513 = vpack.c.b16 %v377, %v369
    %v514 = vpack.c.b16 %v378, %v370
    %v515 = vpack.c.b16 %v379, %v371
    %v516 = vpack.c.b16 %v380, %v372
    %v517 = vpack.c.b16 %v381, %v373
    %v518 = vpack.c.b16 %v382, %v374
    %v519 = vpack.c.b16 %v383, %v375
    %v520 = vpack.c.b16 %v392, %v384
    %v521 = vpack.c.b16 %v393, %v385
    %v522 = vpack.c.b16 %v394, %v386
    %v523 = vpack.c.b16 %v395, %v387
    %v524 = vpack.c.b16 %v396, %v388
    %v525 = vpack.c.b16 %v397, %v389
    %v526 = vpack.c.b16 %v398, %v390
    %v527 = vpack.c.b16 %v399, %v391
    %v528 = vpack.c.b16 %v408, %v400
    %v529 = vpack.c.b16 %v409, %v401
    %v530 = vpack.c.b16 %v410, %v402
    %v531 = vpack.c.b16 %v411, %v403
    %v532 = vpack.c.b16 %v412, %v404
    %v533 = vpack.c.b16 %v413, %v405
    %v534 = vpack.c.b16 %v414, %v406
    %v535 = vpack.c.b16 %v415, %v407
    %v536 = vpack.c.b16 %v424, %v416
    %v537 = vpack.c.b16 %v425, %v417
    %v538 = vpack.c.b16 %v426, %v418
    %v539 = vpack.c.b16 %v427, %v419
    %v540 = vpack.c.b16 %v428, %v420
    %v541 = vpack.c.b16 %v429, %v421
    %v542 = vpack.c.b16 %v430, %v422
    %v543 = vpack.c.b16 %v431, %v423
    %v544 = vpack.c.b16 %v440, %v432
    %v545 = vpack.c.b16 %v441, %v433
    %v546 = vpack.c.b16 %v442, %v434
    %v547 = vpack.c.b16 %v443, %v435
    %v548 = vpack.c.b16 %v444, %v436
    %v549 = vpack.c.b16 %v445, %v437
    %v550 = vpack.c.b16 %v446, %v438
    %v551 = vpack.c.b16 %v447, %v439
    %v552 = vpack.c.b16 %v456, %v448
    %v553 = vpack.c.b16 %v457, %v449
    %v554 = vpack.c.b16 %v458, %v450
    %v555 = vpack.c.b16 %v459, %v451
    %v556 = vpack.c.b16 %v460, %v452
    %v557 = vpack.c.b16 %v461, %v453
    %v558 = vpack.c.b16 %v462, %v454
    %v559 = vpack.c.b16 %v463, %v455
    %v560 = vpack.c.b16 %v472, %v464
    %v561 = vpack.c.b16 %v473, %v465
    %v562 = vpack.c.b16 %v474, %v466
    %v563 = vpack.c.b16 %v475, %v467
    %v564 = vpack.c.b16 %v476, %v468
    %v565 = vpack.c.b16 %v477, %v469
    %v566 = vpack.c.b16 %v478, %v470
    %v567 = vpack.c.b16 %v479, %v471
    %vm656 = vcmask 392192
    %v658 = vsel %vm656, %v214, 0
    %660 = vmatprep.subr.bf16.mxu0 %v537
    %661 = vmatpush1.bf16.msra.mxu0 %v536
    %662 = vmatprep.subr.bf16.mxu0 %v529
    %663 = vmatpush1.bf16.msra.mxu0 %v528
    %664 = vmatprep.subr.bf16.mxu0 %v521
    %665 = vmatpush1.bf16.msra.mxu0 %v520
    %666 = vmatprep.subr.bf16.mxu0 %v513
    %667 = vmatpush1.bf16.msra.mxu0 %v512
    %668 = vmatprep.subr.bf16.mxu0 %v505
    %669 = vmatpush1.bf16.msra.mxu0 %v504
    %670 = vmatprep.subr.bf16.mxu0 %v497
    %671 = vmatpush1.bf16.msra.mxu0 %v496
    %672 = vmatprep.subr.bf16.mxu0 %v489
    %673 = vmatpush1.bf16.msra.mxu0 %v488
    %674 = vmatprep.subr.bf16.mxu0 %v481
    %675 = vmatpush1.bf16.msra.mxu0 %v480
    %676 = vmatprep.subr.bf16.mxu0 0
    %677 = vmatpush2.bf16.msra.mxu0 0
    %678 = vmatprep.subr.bf16.mxu0 0
    %679 = vmatpush2.bf16.msra.mxu0 0
    %680 = vmatprep.subr.bf16.mxu0 0
    %681 = vmatpush2.bf16.msra.mxu0 0
    %682 = vmatprep.subr.bf16.mxu0 0
    %683 = vmatpush2.bf16.msra.mxu0 0
    %684 = vmatprep.subr.bf16.mxu0 0
    %685 = vmatpush2.bf16.msra.mxu0 0
    %686 = vmatprep.subr.bf16.mxu0 %v561
    %687 = vmatpush2.bf16.msra.mxu0 %v560
    %688 = vmatprep.subr.bf16.mxu0 %v553
    %689 = vmatpush2.bf16.msra.mxu0 %v552
    %690 = vmatprep.subr.bf16.mxu0 %v545
    %691 = vmatpush2.bf16.msra.mxu0 %v544
    %692 = vmatprep.mubr.bf16.mxu0 %v658
    %693 = vmatmul.mubr.bf16.gmra.mxu0 %v213
    %v694 = vpop.f32.mrf.mxu0
    %v695 = vadd.f32 %v170, %v694
    %v696 = vpop.f32.mrf.mxu0
    %v697 = vadd.f32 %v174, %v696
    %v698 = vpop.f32.mrf.mxu0
    %v699 = vadd.f32 %v170, %v698
    %v700 = vpop.f32.mrf.mxu0
    %v701 = vadd.f32 %v174, %v700
    %702 = vdwg.mxu0
    %703 = vmatprep.subr.bf16.mxu0 %v539
    %704 = vmatpush1.bf16.msra.mxu0 %v538
    %705 = vmatprep.subr.bf16.mxu0 %v531
    %706 = vmatpush1.bf16.msra.mxu0 %v530
    %707 = vmatprep.subr.bf16.mxu0 %v523
    %708 = vmatpush1.bf16.msra.mxu0 %v522
    %709 = vmatprep.subr.bf16.mxu0 %v515
    %710 = vmatpush1.bf16.msra.mxu0 %v514
    %711 = vmatprep.subr.bf16.mxu0 %v507
    %712 = vmatpush1.bf16.msra.mxu0 %v506
    %713 = vmatprep.subr.bf16.mxu0 %v499
    %714 = vmatpush1.bf16.msra.mxu0 %v498
    %715 = vmatprep.subr.bf16.mxu0 %v491
    %716 = vmatpush1.bf16.msra.mxu0 %v490
    %717 = vmatprep.subr.bf16.mxu0 %v483
    %718 = vmatpush1.bf16.msra.mxu0 %v482
    %719 = vmatprep.subr.bf16.mxu0 0
    %720 = vmatpush2.bf16.msra.mxu0 0
    %721 = vmatprep.subr.bf16.mxu0 0
    %722 = vmatpush2.bf16.msra.mxu0 0
    %723 = vmatprep.subr.bf16.mxu0 0
    %724 = vmatpush2.bf16.msra.mxu0 0
    %725 = vmatprep.subr.bf16.mxu0 0
    %726 = vmatpush2.bf16.msra.mxu0 0
    %727 = vmatprep.subr.bf16.mxu0 0
    %728 = vmatpush2.bf16.msra.mxu0 0
    %729 = vmatprep.subr.bf16.mxu0 %v563
    %730 = vmatpush2.bf16.msra.mxu0 %v562
    %731 = vmatprep.subr.bf16.mxu0 %v555
    %732 = vmatpush2.bf16.msra.mxu0 %v554
    %733 = vmatprep.subr.bf16.mxu0 %v547
    %734 = vmatpush2.bf16.msra.mxu0 %v546
    %735 = vmatprep.mubr.bf16.mxu0 %v658
    %736 = vmatmul.mubr.bf16.gmra.mxu0 %v213
    %v737 = vpop.f32.mrf.mxu0
    %v738 = vadd.f32 %v178, %v737
    %v739 = vpop.f32.mrf.mxu0
    %v740 = vadd.f32 %v182, %v739
    %v741 = vpop.f32.mrf.mxu0
    %v742 = vadd.f32 %v178, %v741
    %v743 = vpop.f32.mrf.mxu0
    %v744 = vadd.f32 %v182, %v743
    %745 = vdwg.mxu0
    %746 = vmatprep.subr.bf16.mxu0 %v541
    %747 = vmatpush1.bf16.msra.mxu0 %v540
    %748 = vmatprep.subr.bf16.mxu0 %v533
    %749 = vmatpush1.bf16.msra.mxu0 %v532
    %750 = vmatprep.subr.bf16.mxu0 %v525
    %751 = vmatpush1.bf16.msra.mxu0 %v524
    %752 = vmatprep.subr.bf16.mxu0 %v517
    %753 = vmatpush1.bf16.msra.mxu0 %v516
    %754 = vmatprep.subr.bf16.mxu0 %v509
    %755 = vmatpush1.bf16.msra.mxu0 %v508
    %756 = vmatprep.subr.bf16.mxu0 %v501
    %757 = vmatpush1.bf16.msra.mxu0 %v500
    %758 = vmatprep.subr.bf16.mxu0 %v493
    %759 = vmatpush1.bf16.msra.mxu0 %v492
    %760 = vmatprep.subr.bf16.mxu0 %v485
    %761 = vmatpush1.bf16.msra.mxu0 %v484
    %762 = vmatprep.subr.bf16.mxu0 0
    %763 = vmatpush2.bf16.msra.mxu0 0
    %764 = vmatprep.subr.bf16.mxu0 0
    %765 = vmatpush2.bf16.msra.mxu0 0
    %766 = vmatprep.subr.bf16.mxu0 0
    %767 = vmatpush2.bf16.msra.mxu0 0
    %768 = vmatprep.subr.bf16.mxu0 0
    %769 = vmatpush2.bf16.msra.mxu0 0
    %770 = vmatprep.subr.bf16.mxu0 0
    %771 = vmatpush2.bf16.msra.mxu0 0
    %772 = vmatprep.subr.bf16.mxu0 %v565
    %773 = vmatpush2.bf16.msra.mxu0 %v564
    %774 = vmatprep.subr.bf16.mxu0 %v557
    %775 = vmatpush2.bf16.msra.mxu0 %v556
    %776 = vmatprep.subr.bf16.mxu0 %v549
    %777 = vmatpush2.bf16.msra.mxu0 %v548
    %778 = vmatprep.mubr.bf16.mxu0 %v658
    %779 = vmatmul.mubr.bf16.gmra.mxu0 %v213
    %v780 = vpop.f32.mrf.mxu0
    %v781 = vadd.f32 %v186, %v780
    %v782 = vpop.f32.mrf.mxu0
    %v783 = vadd.f32 %v190, %v782
    %v784 = vpop.f32.mrf.mxu0
    %v785 = vadd.f32 %v186, %v784
    %v786 = vpop.f32.mrf.mxu0
    %v787 = vadd.f32 %v190, %v786
    %788 = vdwg.mxu0
    %789 = vmatprep.subr.bf16.mxu0 %v543
    %790 = vmatpush1.bf16.msra.mxu0 %v542
    %791 = vmatprep.subr.bf16.mxu0 %v535
    %792 = vmatpush1.bf16.msra.mxu0 %v534
    %793 = vmatprep.subr.bf16.mxu0 %v527
    %794 = vmatpush1.bf16.msra.mxu0 %v526
    %795 = vmatprep.subr.bf16.mxu0 %v519
    %796 = vmatpush1.bf16.msra.mxu0 %v518
    %797 = vmatprep.subr.bf16.mxu0 %v511
    %798 = vmatpush1.bf16.msra.mxu0 %v510
    %799 = vmatprep.subr.bf16.mxu0 %v503
    %800 = vmatpush1.bf16.msra.mxu0 %v502
    %801 = vmatprep.subr.bf16.mxu0 %v495
    %802 = vmatpush1.bf16.msra.mxu0 %v494
    %803 = vmatprep.subr.bf16.mxu0 %v487
    %804 = vmatpush1.bf16.msra.mxu0 %v486
    %805 = vmatprep.subr.bf16.mxu0 0
    %806 = vmatpush2.bf16.msra.mxu0 0
    %807 = vmatprep.subr.bf16.mxu0 0
    %808 = vmatpush2.bf16.msra.mxu0 0
    %809 = vmatprep.subr.bf16.mxu0 0
    %810 = vmatpush2.bf16.msra.mxu0 0
    %811 = vmatprep.subr.bf16.mxu0 0
    %812 = vmatpush2.bf16.msra.mxu0 0
    %813 = vmatprep.subr.bf16.mxu0 0
    %814 = vmatpush2.bf16.msra.mxu0 0
    %815 = vmatprep.subr.bf16.mxu0 %v567
    %816 = vmatpush2.bf16.msra.mxu0 %v566
    %817 = vmatprep.subr.bf16.mxu0 %v559
    %818 = vmatpush2.bf16.msra.mxu0 %v558
    %819 = vmatprep.subr.bf16.mxu0 %v551
    %820 = vmatpush2.bf16.msra.mxu0 %v550
    %821 = vmatprep.mubr.bf16.mxu0 %v658
    %822 = vmatmul.mubr.bf16.gmra.mxu0 %v213
    %v823 = vpop.f32.mrf.mxu0
    %v824 = vadd.f32 %v194, %v823
    %v825 = vpop.f32.mrf.mxu0
    %v826 = vadd.f32 %v198, %v825
    %v827 = vpop.f32.mrf.mxu0
    %v828 = vadd.f32 %v194, %v827
    %v829 = vpop.f32.mrf.mxu0
    %v830 = vadd.f32 %v198, %v829
    %831 = vdwg.mxu0
    %v832 = vmax.f32 %v695, 0.0
    %v833 = vmax.f32 %v697, 0.0
    %v834 = vmax.f32 %v738, 0.0
    %v835 = vmax.f32 %v740, 0.0
    %v836 = vmax.f32 %v781, 0.0
    %v837 = vmax.f32 %v783, 0.0
    %v838 = vmax.f32 %v824, 0.0
    %v839 = vmax.f32 %v826, 0.0
    %v840 = vmax.f32 %v699, 0.0
    %v841 = vmax.f32 %v701, 0.0
    %v842 = vmax.f32 %v742, 0.0
    %v843 = vmax.f32 %v744, 0.0
    %v844 = vmax.f32 %v785, 0.0
    %v845 = vmax.f32 %v787, 0.0
    %v846 = vmax.f32 %v828, 0.0
    %v847 = vmax.f32 %v830, 0.0
    %v848 = vpack.c.bf16 %v840, %v832
    %v849 = vpack.c.bf16 %v841, %v833
    %v850 = vpack.c.bf16 %v842, %v834
    %v851 = vpack.c.bf16 %v843, %v835
    %v852 = vpack.c.bf16 %v844, %v836
    %v853 = vpack.c.bf16 %v845, %v837
    %v854 = vpack.c.bf16 %v846, %v838
    %v855 = vpack.c.bf16 %v847, %v839
    %v856 = vld [vmem:[#allocation8] sm:$0xf]
    %v857 = vld [vmem:[#allocation8 + $0x4] sm:$0xf]
    %v858 = vld [vmem:[#allocation8 + $0x8] sm:$0xf]
    %v859 = vld [vmem:[#allocation8 + $0xc] sm:$0xf]
    %v860 = vld [vmem:[#allocation8 + $0x10] sm:$0xf]
    %v861 = vld [vmem:[#allocation8 + $0x14] sm:$0xf]
    %v862 = vld [vmem:[#allocation8 + $0x18] sm:$0xf]
    %v863 = vld [vmem:[#allocation8 + $0x1c] sm:$0xf]
    %v864 = vld [vmem:[#allocation8 + $0x20] sm:$0xf]
    %v865 = vld [vmem:[#allocation8 + $0x24] sm:$0xf]
    %v866 = vld [vmem:[#allocation8 + $0x28] sm:$0xf]
    %v867 = vld [vmem:[#allocation8 + $0x2c] sm:$0xf]
    %v868 = vld [vmem:[#allocation8 + $0x30] sm:$0xf]
    %v869 = vld [vmem:[#allocation8 + $0x34] sm:$0xf]
    %v870 = vld [vmem:[#allocation8 + $0x38] sm:$0xf]
    %v871 = vld [vmem:[#allocation8 + $0x3c] sm:$0xf]
    %v872 = vld [vmem:[#allocation8 + $0x40] sm:$0xf]
    %v873 = vld [vmem:[#allocation8 + $0x44] sm:$0xf]
    %v874 = vld [vmem:[#allocation8 + $0x48] sm:$0xf]
    %v875 = vld [vmem:[#allocation8 + $0x4c] sm:$0xf]
    %v876 = vld [vmem:[#allocation8 + $0x50] sm:$0xf]
    %v877 = vld [vmem:[#allocation8 + $0x54] sm:$0xf]
    %v878 = vld [vmem:[#allocation8 + $0x58] sm:$0xf]
    %v879 = vld [vmem:[#allocation8 + $0x5c] sm:$0xf]
    %v880 = vld [vmem:[#allocation8 + $0x60] sm:$0xf]
    %v881 = vld [vmem:[#allocation8 + $0x64] sm:$0xf]
    %v882 = vld [vmem:[#allocation8 + $0x68] sm:$0xf]
    %v883 = vld [vmem:[#allocation8 + $0x6c] sm:$0xf]
    %v884 = vld [vmem:[#allocation8 + $0x70] sm:$0xf]
    %v885 = vld [vmem:[#allocation8 + $0x74] sm:$0xf]
    %v886 = vld [vmem:[#allocation8 + $0x78] sm:$0xf]
    %v887 = vld [vmem:[#allocation8 + $0x7c] sm:$0xf]
    %v888 = vld [vmem:[#allocation8 + $0x80] sm:$0xf]
    %v889 = vld [vmem:[#allocation8 + $0x84] sm:$0xf]
    %v890 = vld [vmem:[#allocation8 + $0x88] sm:$0xf]
    %v891 = vld [vmem:[#allocation8 + $0x8c] sm:$0xf]
    %v892 = vld [vmem:[#allocation8 + $0x90] sm:$0xf]
    %v893 = vld [vmem:[#allocation8 + $0x94] sm:$0xf]
    %v894 = vld [vmem:[#allocation8 + $0x98] sm:$0xf]
    %v895 = vld [vmem:[#allocation8 + $0x9c] sm:$0xf]
    %v896 = vld [vmem:[#allocation8 + $0xa0] sm:$0xf]
    %v897 = vld [vmem:[#allocation8 + $0xa4] sm:$0xf]
    %v898 = vld [vmem:[#allocation8 + $0xa8] sm:$0xf]
    %v899 = vld [vmem:[#allocation8 + $0xac] sm:$0xf]
    %v900 = vld [vmem:[#allocation8 + $0xb0] sm:$0xf]
    %v901 = vld [vmem:[#allocation8 + $0xb4] sm:$0xf]
    %v902 = vld [vmem:[#allocation8 + $0xb8] sm:$0xf]
    %v903 = vld [vmem:[#allocation8 + $0xbc] sm:$0xf]
    %v904 = vld [vmem:[#allocation8 + $0xc0] sm:$0xf]
    %v905 = vld [vmem:[#allocation8 + $0xc4] sm:$0xf]
    %v906 = vld [vmem:[#allocation8 + $0xc8] sm:$0xf]
    %v907 = vld [vmem:[#allocation8 + $0xcc] sm:$0xf]
    %v908 = vld [vmem:[#allocation8 + $0xd0] sm:$0xf]
    %v909 = vld [vmem:[#allocation8 + $0xd4] sm:$0xf]
    %v910 = vld [vmem:[#allocation8 + $0xd8] sm:$0xf]
    %v911 = vld [vmem:[#allocation8 + $0xdc] sm:$0xf]
    %v912 = vld [vmem:[#allocation8 + $0xe0] sm:$0xf]
    %v913 = vld [vmem:[#allocation8 + $0xe4] sm:$0xf]
    %v914 = vld [vmem:[#allocation8 + $0xe8] sm:$0xf]
    %v915 = vld [vmem:[#allocation8 + $0xec] sm:$0xf]
    %v916 = vld [vmem:[#allocation8 + $0xf0] sm:$0xf]
    %v917 = vld [vmem:[#allocation8 + $0xf4] sm:$0xf]
    %v918 = vld [vmem:[#allocation8 + $0xf8] sm:$0xf]
    %v919 = vld [vmem:[#allocation8 + $0xfc] sm:$0xf]
    %v920 = vld [vmem:[#allocation8 + $0x100] sm:$0xf]
    %v921 = vld [vmem:[#allocation8 + $0x104] sm:$0xf]
    %v922 = vld [vmem:[#allocation8 + $0x108] sm:$0xf]
    %v923 = vld [vmem:[#allocation8 + $0x10c] sm:$0xf]
    %v924 = vld [vmem:[#allocation8 + $0x110] sm:$0xf]
    %v925 = vld [vmem:[#allocation8 + $0x114] sm:$0xf]
    %v926 = vld [vmem:[#allocation8 + $0x118] sm:$0xf]
    %v927 = vld [vmem:[#allocation8 + $0x11c] sm:$0xf]
    %v928 = vld [vmem:[#allocation8 + $0x120] sm:$0xf]
    %v929 = vld [vmem:[#allocation8 + $0x124] sm:$0xf]
    %v930 = vld [vmem:[#allocation8 + $0x128] sm:$0xf]
    %v931 = vld [vmem:[#allocation8 + $0x12c] sm:$0xf]
    %v932 = vld [vmem:[#allocation8 + $0x130] sm:$0xf]
    %v933 = vld [vmem:[#allocation8 + $0x134] sm:$0xf]
    %v934 = vld [vmem:[#allocation8 + $0x138] sm:$0xf]
    %v935 = vld [vmem:[#allocation8 + $0x13c] sm:$0xf]
    %v936 = vld [vmem:[#allocation8 + $0x140] sm:$0xf]
    %v937 = vld [vmem:[#allocation8 + $0x144] sm:$0xf]
    %v938 = vld [vmem:[#allocation8 + $0x148] sm:$0xf]
    %v939 = vld [vmem:[#allocation8 + $0x14c] sm:$0xf]
    %v940 = vld [vmem:[#allocation8 + $0x150] sm:$0xf]
    %v941 = vld [vmem:[#allocation8 + $0x154] sm:$0xf]
    %v942 = vld [vmem:[#allocation8 + $0x158] sm:$0xf]
    %v943 = vld [vmem:[#allocation8 + $0x15c] sm:$0xf]
    %v944 = vld [vmem:[#allocation8 + $0x160] sm:$0xf]
    %v945 = vld [vmem:[#allocation8 + $0x164] sm:$0xf]
    %v946 = vld [vmem:[#allocation8 + $0x168] sm:$0xf]
    %v947 = vld [vmem:[#allocation8 + $0x16c] sm:$0xf]
    %v948 = vld [vmem:[#allocation8 + $0x170] sm:$0xf]
    %v949 = vld [vmem:[#allocation8 + $0x174] sm:$0xf]
    %v950 = vld [vmem:[#allocation8 + $0x178] sm:$0xf]
    %v951 = vld [vmem:[#allocation8 + $0x17c] sm:$0xf]
    %v952 = vld [vmem:[#allocation8 + $0x180] sm:$0xf]
    %v953 = vld [vmem:[#allocation8 + $0x184] sm:$0xf]
    %v954 = vld [vmem:[#allocation8 + $0x188] sm:$0xf]
    %v955 = vld [vmem:[#allocation8 + $0x18c] sm:$0xf]
    %v956 = vld [vmem:[#allocation8 + $0x190] sm:$0xf]
    %v957 = vld [vmem:[#allocation8 + $0x194] sm:$0xf]
    %v958 = vld [vmem:[#allocation8 + $0x198] sm:$0xf]
    %v959 = vld [vmem:[#allocation8 + $0x19c] sm:$0xf]
    %v960 = vld [vmem:[#allocation8 + $0x1a0] sm:$0xf]
    %v961 = vld [vmem:[#allocation8 + $0x1a4] sm:$0xf]
    %v962 = vld [vmem:[#allocation8 + $0x1a8] sm:$0xf]
    %v963 = vld [vmem:[#allocation8 + $0x1ac] sm:$0xf]
    %v964 = vld [vmem:[#allocation8 + $0x1b0] sm:$0xf]
    %v965 = vld [vmem:[#allocation8 + $0x1b4] sm:$0xf]
    %v966 = vld [vmem:[#allocation8 + $0x1b8] sm:$0xf]
    %v967 = vld [vmem:[#allocation8 + $0x1bc] sm:$0xf]
    %v968 = vld [vmem:[#allocation8 + $0x1c0] sm:$0xf]
    %v969 = vld [vmem:[#allocation8 + $0x1c4] sm:$0xf]
    %v970 = vld [vmem:[#allocation8 + $0x1c8] sm:$0xf]
    %v971 = vld [vmem:[#allocation8 + $0x1cc] sm:$0xf]
    %v972 = vld [vmem:[#allocation8 + $0x1d0] sm:$0xf]
    %v973 = vld [vmem:[#allocation8 + $0x1d4] sm:$0xf]
    %v974 = vld [vmem:[#allocation8 + $0x1d8] sm:$0xf]
    %v975 = vld [vmem:[#allocation8 + $0x1dc] sm:$0xf]
    %v976 = vld [vmem:[#allocation8 + $0x1e0] sm:$0xf]
    %v977 = vld [vmem:[#allocation8 + $0x1e4] sm:$0xf]
    %v978 = vld [vmem:[#allocation8 + $0x1e8] sm:$0xf]
    %v979 = vld [vmem:[#allocation8 + $0x1ec] sm:$0xf]
    %v980 = vld [vmem:[#allocation8 + $0x1f0] sm:$0xf]
    %v981 = vld [vmem:[#allocation8 + $0x1f4] sm:$0xf]
    %v982 = vld [vmem:[#allocation8 + $0x1f8] sm:$0xf]
    %v983 = vld [vmem:[#allocation8 + $0x1fc] sm:$0xf]
    %v984 = vld [vmem:[%s4] sm:$0x1]
    %v986 = vlaneseq
    %v987 = vshrl.u32 %v986, 7
    %v988 = vsub.s32 0, %v987
    %v989 = vrot.slane %v984, %v988
    %v1119 = vunpack.c.l.b16 %v856
    %v1120 = vunpack.c.l.b16 %v857
    %v1121 = vunpack.c.l.b16 %v858
    %v1122 = vunpack.c.l.b16 %v859
    %v1123 = vunpack.c.l.b16 %v860
    %v1124 = vunpack.c.l.b16 %v861
    %v1125 = vunpack.c.l.b16 %v862
    %v1126 = vunpack.c.l.b16 %v863
    %v1127 = vunpack.c.l.b16 %v864
    %v1128 = vunpack.c.l.b16 %v865
    %v1129 = vunpack.c.l.b16 %v866
    %v1130 = vunpack.c.l.b16 %v867
    %v1131 = vunpack.c.l.b16 %v868
    %v1132 = vunpack.c.l.b16 %v869
    %v1133 = vunpack.c.l.b16 %v870
    %v1134 = vunpack.c.l.b16 %v871
    %v1135 = vunpack.c.l.b16 %v872
    %v1136 = vunpack.c.l.b16 %v873
    %v1137 = vunpack.c.l.b16 %v874
    %v1138 = vunpack.c.l.b16 %v875
    %v1139 = vunpack.c.l.b16 %v876
    %v1140 = vunpack.c.l.b16 %v877
    %v1141 = vunpack.c.l.b16 %v878
    %v1142 = vunpack.c.l.b16 %v879
    %v1143 = vunpack.c.l.b16 %v880
    %v1144 = vunpack.c.l.b16 %v881
    %v1145 = vunpack.c.l.b16 %v882
    %v1146 = vunpack.c.l.b16 %v883
    %v1147 = vunpack.c.l.b16 %v884
    %v1148 = vunpack.c.l.b16 %v885
    %v1149 = vunpack.c.l.b16 %v886
    %v1150 = vunpack.c.l.b16 %v887
    %v1151 = vunpack.c.l.b16 %v888
    %v1152 = vunpack.c.l.b16 %v889
    %v1153 = vunpack.c.l.b16 %v890
    %v1154 = vunpack.c.l.b16 %v891
    %v1155 = vunpack.c.l.b16 %v892
    %v1156 = vunpack.c.l.b16 %v893
    %v1157 = vunpack.c.l.b16 %v894
    %v1158 = vunpack.c.l.b16 %v895
    %v1159 = vunpack.c.l.b16 %v896
    %v1160 = vunpack.c.l.b16 %v897
    %v1161 = vunpack.c.l.b16 %v898
    %v1162 = vunpack.c.l.b16 %v899
    %v1163 = vunpack.c.l.b16 %v900
    %v1164 = vunpack.c.l.b16 %v901
    %v1165 = vunpack.c.l.b16 %v902
    %v1166 = vunpack.c.l.b16 %v903
    %v1167 = vunpack.c.l.b16 %v904
    %v1168 = vunpack.c.l.b16 %v905
    %v1169 = vunpack.c.l.b16 %v906
    %v1170 = vunpack.c.l.b16 %v907
    %v1171 = vunpack.c.l.b16 %v908
    %v1172 = vunpack.c.l.b16 %v909
    %v1173 = vunpack.c.l.b16 %v910
    %v1174 = vunpack.c.l.b16 %v911
    %v1175 = vunpack.c.l.b16 %v912
    %v1176 = vunpack.c.l.b16 %v913
    %v1177 = vunpack.c.l.b16 %v914
    %v1178 = vunpack.c.l.b16 %v915
    %v1179 = vunpack.c.l.b16 %v916
    %v1180 = vunpack.c.l.b16 %v917
    %v1181 = vunpack.c.l.b16 %v918
    %v1182 = vunpack.c.l.b16 %v919
    %v1183 = vunpack.c.l.b16 %v920
    %v1184 = vunpack.c.l.b16 %v921
    %v1185 = vunpack.c.l.b16 %v922
    %v1186 = vunpack.c.l.b16 %v923
    %v1187 = vunpack.c.l.b16 %v924
    %v1188 = vunpack.c.l.b16 %v925
    %v1189 = vunpack.c.l.b16 %v926
    %v1190 = vunpack.c.l.b16 %v927
    %v1191 = vunpack.c.l.b16 %v928
    %v1192 = vunpack.c.l.b16 %v929
    %v1193 = vunpack.c.l.b16 %v930
    %v1194 = vunpack.c.l.b16 %v931
    %v1195 = vunpack.c.l.b16 %v932
    %v1196 = vunpack.c.l.b16 %v933
    %v1197 = vunpack.c.l.b16 %v934
    %v1198 = vunpack.c.l.b16 %v935
    %v1199 = vunpack.c.l.b16 %v936
    %v1200 = vunpack.c.l.b16 %v937
    %v1201 = vunpack.c.l.b16 %v938
    %v1202 = vunpack.c.l.b16 %v939
    %v1203 = vunpack.c.l.b16 %v940
    %v1204 = vunpack.c.l.b16 %v941
    %v1205 = vunpack.c.l.b16 %v942
    %v1206 = vunpack.c.l.b16 %v943
    %v1207 = vunpack.c.l.b16 %v944
    %v1208 = vunpack.c.l.b16 %v945
    %v1209 = vunpack.c.l.b16 %v946
    %v1210 = vunpack.c.l.b16 %v947
    %v1211 = vunpack.c.l.b16 %v948
    %v1212 = vunpack.c.l.b16 %v949
    %v1213 = vunpack.c.l.b16 %v950
    %v1214 = vunpack.c.l.b16 %v951
    %v1215 = vunpack.c.l.b16 %v952
    %v1216 = vunpack.c.l.b16 %v953
    %v1217 = vunpack.c.l.b16 %v954
    %v1218 = vunpack.c.l.b16 %v955
    %v1219 = vunpack.c.l.b16 %v956
    %v1220 = vunpack.c.l.b16 %v957
    %v1221 = vunpack.c.l.b16 %v958
    %v1222 = vunpack.c.l.b16 %v959
    %v1223 = vunpack.c.l.b16 %v960
    %v1224 = vunpack.c.l.b16 %v961
    %v1225 = vunpack.c.l.b16 %v962
    %v1226 = vunpack.c.l.b16 %v963
    %v1227 = vunpack.c.l.b16 %v964
    %v1228 = vunpack.c.l.b16 %v965
    %v1229 = vunpack.c.l.b16 %v966
    %v1230 = vunpack.c.l.b16 %v967
    %v1231 = vunpack.c.l.b16 %v968
    %v1232 = vunpack.c.l.b16 %v969
    %v1233 = vunpack.c.l.b16 %v970
    %v1234 = vunpack.c.l.b16 %v971
    %v1235 = vunpack.c.l.b16 %v972
    %v1236 = vunpack.c.l.b16 %v973
    %v1237 = vunpack.c.l.b16 %v974
    %v1238 = vunpack.c.l.b16 %v975
    %v1239 = vunpack.c.l.b16 %v976
    %v1240 = vunpack.c.l.b16 %v977
    %v1241 = vunpack.c.l.b16 %v978
    %v1242 = vunpack.c.l.b16 %v979
    %v1243 = vunpack.c.l.b16 %v980
    %v1244 = vunpack.c.l.b16 %v981
    %v1245 = vunpack.c.l.b16 %v982
    %v1246 = vunpack.c.l.b16 %v983
    %v1247 = vpack.c.b16 %v1120, %v1119
    %v1248 = vpack.c.b16 %v1122, %v1121
    %v1249 = vpack.c.b16 %v1124, %v1123
    %v1250 = vpack.c.b16 %v1126, %v1125
    %v1251 = vpack.c.b16 %v1128, %v1127
    %v1252 = vpack.c.b16 %v1130, %v1129
    %v1253 = vpack.c.b16 %v1132, %v1131
    %v1254 = vpack.c.b16 %v1134, %v1133
    %v1255 = vpack.c.b16 %v1136, %v1135
    %v1256 = vpack.c.b16 %v1138, %v1137
    %v1257 = vpack.c.b16 %v1140, %v1139
    %v1258 = vpack.c.b16 %v1142, %v1141
    %v1259 = vpack.c.b16 %v1144, %v1143
    %v1260 = vpack.c.b16 %v1146, %v1145
    %v1261 = vpack.c.b16 %v1148, %v1147
    %v1262 = vpack.c.b16 %v1150, %v1149
    %v1263 = vpack.c.b16 %v1152, %v1151
    %v1264 = vpack.c.b16 %v1154, %v1153
    %v1265 = vpack.c.b16 %v1156, %v1155
    %v1266 = vpack.c.b16 %v1158, %v1157
    %v1267 = vpack.c.b16 %v1160, %v1159
    %v1268 = vpack.c.b16 %v1162, %v1161
    %v1269 = vpack.c.b16 %v1164, %v1163
    %v1270 = vpack.c.b16 %v1166, %v1165
    %v1271 = vpack.c.b16 %v1168, %v1167
    %v1272 = vpack.c.b16 %v1170, %v1169
    %v1273 = vpack.c.b16 %v1172, %v1171
    %v1274 = vpack.c.b16 %v1174, %v1173
    %v1275 = vpack.c.b16 %v1176, %v1175
    %v1276 = vpack.c.b16 %v1178, %v1177
    %v1277 = vpack.c.b16 %v1180, %v1179
    %v1278 = vpack.c.b16 %v1182, %v1181
    %v1279 = vpack.c.b16 %v1184, %v1183
    %v1280 = vpack.c.b16 %v1186, %v1185
    %v1281 = vpack.c.b16 %v1188, %v1187
    %v1282 = vpack.c.b16 %v1190, %v1189
    %v1283 = vpack.c.b16 %v1192, %v1191
    %v1284 = vpack.c.b16 %v1194, %v1193
    %v1285 = vpack.c.b16 %v1196, %v1195
    %v1286 = vpack.c.b16 %v1198, %v1197
    %v1287 = vpack.c.b16 %v1200, %v1199
    %v1288 = vpack.c.b16 %v1202, %v1201
    %v1289 = vpack.c.b16 %v1204, %v1203
    %v1290 = vpack.c.b16 %v1206, %v1205
    %v1291 = vpack.c.b16 %v1208, %v1207
    %v1292 = vpack.c.b16 %v1210, %v1209
    %v1293 = vpack.c.b16 %v1212, %v1211
    %v1294 = vpack.c.b16 %v1214, %v1213
    %v1295 = vpack.c.b16 %v1216, %v1215
    %v1296 = vpack.c.b16 %v1218, %v1217
    %v1297 = vpack.c.b16 %v1220, %v1219
    %v1298 = vpack.c.b16 %v1222, %v1221
    %v1299 = vpack.c.b16 %v1224, %v1223
    %v1300 = vpack.c.b16 %v1226, %v1225
    %v1301 = vpack.c.b16 %v1228, %v1227
    %v1302 = vpack.c.b16 %v1230, %v1229
    %v1303 = vpack.c.b16 %v1232, %v1231
    %v1304 = vpack.c.b16 %v1234, %v1233
    %v1305 = vpack.c.b16 %v1236, %v1235
    %v1306 = vpack.c.b16 %v1238, %v1237
    %v1307 = vpack.c.b16 %v1240, %v1239
    %v1308 = vpack.c.b16 %v1242, %v1241
    %v1309 = vpack.c.b16 %v1244, %v1243
    %v1310 = vpack.c.b16 %v1246, %v1245
    %1375 = vmatprep.subr.bf16.mxu0 0
    %1376 = vmatpush1.bf16.msra.mxu0 %v1254
    %1377 = vmatprep.subr.bf16.mxu0 0
    %1378 = vmatpush1.bf16.msra.mxu0 %v1253
    %1379 = vmatprep.subr.bf16.mxu0 0
    %1380 = vmatpush1.bf16.msra.mxu0 %v1252
    %1381 = vmatprep.subr.bf16.mxu0 0
    %1382 = vmatpush1.bf16.msra.mxu0 %v1251
    %1383 = vmatprep.subr.bf16.mxu0 0
    %1384 = vmatpush1.bf16.msra.mxu0 %v1250
    %1385 = vmatprep.subr.bf16.mxu0 0
    %1386 = vmatpush1.bf16.msra.mxu0 %v1249
    %1387 = vmatprep.subr.bf16.mxu0 0
    %1388 = vmatpush1.bf16.msra.mxu0 %v1248
    %1389 = vmatprep.subr.bf16.mxu0 0
    %1390 = vmatpush1.bf16.msra.mxu0 %v1247
    %1391 = vmatprep.subr.bf16.mxu0 0
    %1392 = vmatpush2.bf16.msra.mxu0 %v1262
    %1393 = vmatprep.subr.bf16.mxu0 0
    %1394 = vmatpush2.bf16.msra.mxu0 %v1261
    %1395 = vmatprep.subr.bf16.mxu0 0
    %1396 = vmatpush2.bf16.msra.mxu0 %v1260
    %1397 = vmatprep.subr.bf16.mxu0 0
    %1398 = vmatpush2.bf16.msra.mxu0 %v1259
    %1399 = vmatprep.subr.bf16.mxu0 0
    %1400 = vmatpush2.bf16.msra.mxu0 %v1258
    %1401 = vmatprep.subr.bf16.mxu0 0
    %1402 = vmatpush2.bf16.msra.mxu0 %v1257
    %1403 = vmatprep.subr.bf16.mxu0 0
    %1404 = vmatpush2.bf16.msra.mxu0 %v1256
    %1405 = vmatprep.subr.bf16.mxu0 0
    %1406 = vmatpush2.bf16.msra.mxu0 %v1255
    %1407 = vmatprep.mubr.bf16.mxu0 %v849
    %1408 = vmatmul.mubr.bf16.gmra.mxu0 %v848
    %v1409 = vpop.f32.mrf.mxu0
    %v1410 = vadd.f32 %v989, %v1409
    %v1411 = vpop.f32.mrf.mxu0
    %v1412 = vpop.f32.mrf.mxu0
    %v1413 = vadd.f32 %v989, %v1412
    %v1414 = vpop.f32.mrf.mxu0
    %1415 = vdwg.mxu0
    %1416 = vmatprep.subr.bf16.mxu0 0
    %1417 = vmatpush1.bf16.msra.mxu0 %v1270
    %1418 = vmatprep.subr.bf16.mxu0 0
    %1419 = vmatpush1.bf16.msra.mxu0 %v1269
    %1420 = vmatprep.subr.bf16.mxu0 0
    %1421 = vmatpush1.bf16.msra.mxu0 %v1268
    %1422 = vmatprep.subr.bf16.mxu0 0
    %1423 = vmatpush1.bf16.msra.mxu0 %v1267
    %1424 = vmatprep.subr.bf16.mxu0 0
    %1425 = vmatpush1.bf16.msra.mxu0 %v1266
    %1426 = vmatprep.subr.bf16.mxu0 0
    %1427 = vmatpush1.bf16.msra.mxu0 %v1265
    %1428 = vmatprep.subr.bf16.mxu0 0
    %1429 = vmatpush1.bf16.msra.mxu0 %v1264
    %1430 = vmatprep.subr.bf16.mxu0 0
    %1431 = vmatpush1.bf16.msra.mxu0 %v1263
    %1432 = vmatprep.subr.bf16.mxu0 0
    %1433 = vmatpush2.bf16.msra.mxu0 %v1278
    %1434 = vmatprep.subr.bf16.mxu0 0
    %1435 = vmatpush2.bf16.msra.mxu0 %v1277
    %1436 = vmatprep.subr.bf16.mxu0 0
    %1437 = vmatpush2.bf16.msra.mxu0 %v1276
    %1438 = vmatprep.subr.bf16.mxu0 0
    %1439 = vmatpush2.bf16.msra.mxu0 %v1275
    %1440 = vmatprep.subr.bf16.mxu0 0
    %1441 = vmatpush2.bf16.msra.mxu0 %v1274
    %1442 = vmatprep.subr.bf16.mxu0 0
    %1443 = vmatpush2.bf16.msra.mxu0 %v1273
    %1444 = vmatprep.subr.bf16.mxu0 0
    %1445 = vmatpush2.bf16.msra.mxu0 %v1272
    %1446 = vmatprep.subr.bf16.mxu0 0
    %1447 = vmatpush2.bf16.msra.mxu0 %v1271
    %1448 = vmatprep.mubr.bf16.mxu0 %v851
    %1449 = vmatmul.mubr.bf16.gmra.mxu0 %v850
    %v1450 = vpop.f32.mrf.mxu0
    %v1451 = vadd.f32 %v1410, %v1450
    %v1452 = vpop.f32.mrf.mxu0
    %v1453 = vpop.f32.mrf.mxu0
    %v1454 = vadd.f32 %v1413, %v1453
    %v1455 = vpop.f32.mrf.mxu0
    %1456 = vdwg.mxu0
    %1457 = vmatprep.subr.bf16.mxu0 0
    %1458 = vmatpush1.bf16.msra.mxu0 %v1286
    %1459 = vmatprep.subr.bf16.mxu0 0
    %1460 = vmatpush1.bf16.msra.mxu0 %v1285
    %1461 = vmatprep.subr.bf16.mxu0 0
    %1462 = vmatpush1.bf16.msra.mxu0 %v1284
    %1463 = vmatprep.subr.bf16.mxu0 0
    %1464 = vmatpush1.bf16.msra.mxu0 %v1283
    %1465 = vmatprep.subr.bf16.mxu0 0
    %1466 = vmatpush1.bf16.msra.mxu0 %v1282
    %1467 = vmatprep.subr.bf16.mxu0 0
    %1468 = vmatpush1.bf16.msra.mxu0 %v1281
    %1469 = vmatprep.subr.bf16.mxu0 0
    %1470 = vmatpush1.bf16.msra.mxu0 %v1280
    %1471 = vmatprep.subr.bf16.mxu0 0
    %1472 = vmatpush1.bf16.msra.mxu0 %v1279
    %1473 = vmatprep.subr.bf16.mxu0 0
    %1474 = vmatpush2.bf16.msra.mxu0 %v1294
    %1475 = vmatprep.subr.bf16.mxu0 0
    %1476 = vmatpush2.bf16.msra.mxu0 %v1293
    %1477 = vmatprep.subr.bf16.mxu0 0
    %1478 = vmatpush2.bf16.msra.mxu0 %v1292
    %1479 = vmatprep.subr.bf16.mxu0 0
    %1480 = vmatpush2.bf16.msra.mxu0 %v1291
    %1481 = vmatprep.subr.bf16.mxu0 0
    %1482 = vmatpush2.bf16.msra.mxu0 %v1290
    %1483 = vmatprep.subr.bf16.mxu0 0
    %1484 = vmatpush2.bf16.msra.mxu0 %v1289
    %1485 = vmatprep.subr.bf16.mxu0 0
    %1486 = vmatpush2.bf16.msra.mxu0 %v1288
    %1487 = vmatprep.subr.bf16.mxu0 0
    %1488 = vmatpush2.bf16.msra.mxu0 %v1287
    %1489 = vmatprep.mubr.bf16.mxu0 %v853
    %1490 = vmatmul.mubr.bf16.gmra.mxu0 %v852
    %v1491 = vpop.f32.mrf.mxu0
    %v1492 = vadd.f32 %v1451, %v1491
    %v1493 = vpop.f32.mrf.mxu0
    %v1494 = vpop.f32.mrf.mxu0
    %v1495 = vadd.f32 %v1454, %v1494
    %v1496 = vpop.f32.mrf.mxu0
    %1497 = vdwg.mxu0
    %1498 = vmatprep.subr.bf16.mxu0 0
    %1499 = vmatpush1.bf16.msra.mxu0 %v1302
    %1500 = vmatprep.subr.bf16.mxu0 0
    %1501 = vmatpush1.bf16.msra.mxu0 %v1301
    %1502 = vmatprep.subr.bf16.mxu0 0
    %1503 = vmatpush1.bf16.msra.mxu0 %v1300
    %1504 = vmatprep.subr.bf16.mxu0 0
    %1505 = vmatpush1.bf16.msra.mxu0 %v1299
    %1506 = vmatprep.subr.bf16.mxu0 0
    %1507 = vmatpush1.bf16.msra.mxu0 %v1298
    %1508 = vmatprep.subr.bf16.mxu0 0
    %1509 = vmatpush1.bf16.msra.mxu0 %v1297
    %1510 = vmatprep.subr.bf16.mxu0 0
    %1511 = vmatpush1.bf16.msra.mxu0 %v1296
    %1512 = vmatprep.subr.bf16.mxu0 0
    %1513 = vmatpush1.bf16.msra.mxu0 %v1295
    %1514 = vmatprep.subr.bf16.mxu0 0
    %1515 = vmatpush2.bf16.msra.mxu0 %v1310
    %1516 = vmatprep.subr.bf16.mxu0 0
    %1517 = vmatpush2.bf16.msra.mxu0 %v1309
    %1518 = vmatprep.subr.bf16.mxu0 0
    %1519 = vmatpush2.bf16.msra.mxu0 %v1308
    %1520 = vmatprep.subr.bf16.mxu0 0
    %1521 = vmatpush2.bf16.msra.mxu0 %v1307
    %1522 = vmatprep.subr.bf16.mxu0 0
    %1523 = vmatpush2.bf16.msra.mxu0 %v1306
    %1524 = vmatprep.subr.bf16.mxu0 0
    %1525 = vmatpush2.bf16.msra.mxu0 %v1305
    %1526 = vmatprep.subr.bf16.mxu0 0
    %1527 = vmatpush2.bf16.msra.mxu0 %v1304
    %1528 = vmatprep.subr.bf16.mxu0 0
    %1529 = vmatpush2.bf16.msra.mxu0 %v1303
    %1530 = vmatprep.mubr.bf16.mxu0 %v855
    %1531 = vmatmul.mubr.bf16.gmra.mxu0 %v854
    %v1532 = vpop.f32.mrf.mxu0
    %v1533 = vadd.f32 %v1492, %v1532
    %v1534 = vpop.f32.mrf.mxu0
    %v1535 = vpop.f32.mrf.mxu0
    %v1536 = vadd.f32 %v1495, %v1535
    %v1537 = vpop.f32.mrf.mxu0
    %1538 = vdwg.mxu0
    %1539 = vst [vmem:[#allocation10] sm:$0xff] %v1533
    %1540 = vst [vmem:[#allocation10 + $0x8] sm:$0xff] %v1536
    // Predicated region
    $region38: #{tpu_custom_call.1} parent=1 // pred_check
      _
    $region39: #{tpu_custom_call.1} parent=1 // pred_check_branch
      %1542 = sbr.rel (0) target = $region41
    $region40: #{tpu_custom_call.1} parent=1 // pred_region
      %s1544 = ssub.s32 256, 256
      %1545 = vsyncadd [#allocation4], %s1544
      %s1546 = sshll.u32 [#allocation10], 4
      %s1547 = int_to_ptr.vmem [resolvable:$true] %s1546
      %1552 = dma.vmem_to_hbm [thread:$0]  %s1547, 256, %s5, [#allocation4], 128, 128, 8
    $region41: #{tpu_custom_call.1} parent=1 // pred_fallthru
      _
    // Predicated region
    $region42: #{tpu_custom_call.1} parent=1 // pred_check
      _
    $region43: #{tpu_custom_call.1} parent=1 // pred_check_branch
      %1554 = sbr.rel (0) target = $region45
    $region44: #{tpu_custom_call.1} parent=1 // pred_region
      %1555 = dma.done [#allocation4], 256
    $region45: #{tpu_custom_call.1} parent=1 // pred_fallthru
      _
    %1556 = vsyncpa [#allocation3], 1
    %1557 = vsyncpa [#allocation6], 1
    %1558 = vsyncpa [#allocation9], 1
    %1559 = vsyncpa [#allocation4], 1

</llo_original>
